<compile_context>
chip_gen: v7x
topology: tpu7x:2x2x1
jax: 0.10.0
libtpu: 0.0.40
codegen_flags: <defaults>
</compile_context>

<pallas_src>
import jax
import jax.numpy as jnp
from jax.experimental import pallas as pl
from jax.experimental.pallas import tpu as pltpu


def spatial_attention_kernel(x_ref, wexp_ref, ebc_ref, b_ref, o_ref):
    # x_ref:   [TB, N*H]  (VMEM, lane-dense, input dtype)
    # wexp_ref:[N*H, N]   (VMEM, constant projection matrix, input dtype)
    # ebc_ref: [N, N*H]   (VMEM, constant broadcast matrix, f32)
    # b_ref:   [1]        (SMEM scalar bias, f32)
    # o_ref:   [TB, N*H]  (VMEM, lane-dense)
    x = x_ref[...]

    # Linear(H -> 1) per node as one constant matmul on the MXU:
    # [TB, N*H] @ [N*H, N] -> [TB, N], accumulated in f32.
    scores = jnp.dot(x, wexp_ref[...], preferred_element_type=jnp.float32)
    scores = scores + b_ref[0]

    # softmax over the node axis N (dim=2 of the original [B, T, N, 1]); f32 math.
    m = jnp.max(scores, axis=-1, keepdims=True)
    e = jnp.exp(scores - m)
    weights = e / jnp.sum(e, axis=-1, keepdims=True)        # exact reciprocal

    # Broadcast each node weight across its H lanes: [TB, N] @ [N, N*H] -> [TB, N*H].
    w_full = jnp.dot(weights, ebc_ref[...], preferred_element_type=jnp.float32)

    # Final rescale in the input dtype (bf16 stays bf16 on v6e/v7x VPUs).
    o_ref[...] = (x * w_full.astype(x.dtype)).astype(o_ref.dtype)


def _vmem_limit_bytes():
    """Scoped VMEM limit derived from the actual chip (half of physical VMEM,
    capped at 64 MiB): ~64 MiB on v5e/v6e (128 MiB VMEM), ~32 MiB on v7x (64 MiB)."""
    cap = None
    try:
        cap = getattr(pltpu.get_tpu_info(), "vmem_capacity_bytes", None)
    except Exception:
        cap = None
    if not cap:
        cap = 64 * 1024 * 1024          # conservative fallback: v7x per-TC VMEM
    return min(cap // 2, 64 * 1024 * 1024)


def _choose_block_rows(bt, nh, itemsize, vmem_budget_bytes):
    """Rows of the [B*T, N*H] view processed per grid step."""
    nh_pad = pl.cdiv(nh, 128) * 128            # lane padding of the last dim
    row_in = nh_pad * itemsize                 # one padded row of an in/out block
    # 2x double-buffered (input + output) blocks + ~2 f32 temporaries (w_full, product).
    per_row = 4 * row_in + 2 * nh_pad * 4
    cap_rows = max(1, vmem_budget_bytes // per_row)

    steps_target = 8                            # >= 4 steps per TensorCore on v7x
    floor_rows = max(1, (512 * 1024) // row_in) # keep blocks >= ~512 KiB each
    tb = max(1, min(bt, cap_rows, max(bt // steps_target, floor_rows)))

    # Keep the sublane dim friendly: multiple of 8, or the full array extent.
    if tb >= 8:
        tb = (tb // 8) * 8
    elif bt >= 8:
        tb = 8
    else:
        tb = bt
    return tb


def spatial_attention(x, w, b):
    """x: [B, T, N, H]; w: [1, H] (nn.Linear(H, 1).weight layout); b: [1]."""
    B, T, N, H = x.shape
    BT, NH = B * T, N * H
    x2d = x.reshape(BT, NH)                     # free: contiguous in HBM

    # Constant projection / broadcast matrices for the MXU.
    eye = jnp.eye(N, dtype=jnp.float32)
    w_flat = w.reshape(-1).astype(jnp.float32)                       # [H]
    wexp = (jnp.repeat(eye, H, axis=0)
            * jnp.tile(w_flat, N)[:, None]).astype(x.dtype)          # [N*H, N]
    ebc = jnp.repeat(eye, H, axis=1)                                  # [N, N*H] f32

    vmem_limit = _vmem_limit_bytes()
    tb = _choose_block_rows(BT, NH, x.dtype.itemsize, vmem_limit // 2)
    grid = (pl.cdiv(BT, tb),)   # ragged last block OK: rows independent, OOB masked

    cost = pl.CostEstimate(
        flops=4 * BT * NH * N + 4 * BT * NH,    # two tiny matmuls + elementwise
        transcendentals=BT * N,                 # exp of the scores
        bytes_accessed=2 * BT * NH * x.dtype.itemsize,
    )

    out2d = pl.pallas_call(
        spatial_attention_kernel,
        out_shape=jax.ShapeDtypeStruct((BT, NH), x.dtype),
        grid_spec=pltpu.PrefetchScalarGridSpec(
            num_scalar_prefetch=0,
            grid=grid,
            in_specs=[
                pl.BlockSpec((tb, NH), lambda i: (i, 0)),
                pl.BlockSpec((NH, N), lambda i: (0, 0)),
                pl.BlockSpec((N, NH), lambda i: (0, 0)),
                pl.BlockSpec(memory_space=pltpu.MemorySpace.SMEM),
            ],
            out_specs=pl.BlockSpec((tb, NH), lambda i: (i, 0)),
        ),
        compiler_params=pltpu.CompilerParams(
            dimension_semantics=("parallel",),
            vmem_limit_bytes=vmem_limit),
        cost_estimate=cost,
    )(x2d, wexp, ebc, b.astype(jnp.float32))

    return out2d.reshape(B, T, N, H)


def spatial_attention_ref(x, w, b):
    scores = jnp.einsum("btnh,oh->btno", x, w) + b[0]        # [B, T, N, 1]
    weights = jax.nn.softmax(scores, axis=2)
    return x * weights


if __name__ == "__main__":
    B, T, N, H = 2, 4, 16, 32   # batch, time, spatial nodes, hidden_dim

    key = jax.random.PRNGKey(0)
    kx, kw, kb = jax.random.split(key, 3)

    x = jax.random.normal(kx, (B, T, N, H), dtype=jnp.float32)

    # Deterministic nn.Linear(hidden_dim, 1)-style init: U(-1/sqrt(H), 1/sqrt(H))
    bound = 1.0 / (H ** 0.5)
    w = jax.random.uniform(kw, (1, H), minval=-bound, maxval=bound,
                           dtype=jnp.float32)
    b = jax.random.uniform(kb, (1,), minval=-bound, maxval=bound,
                           dtype=jnp.float32)

    out = spatial_attention(x, w, b)
    out = jax.block_until_ready(out)

    ref = spatial_attention_ref(x, w, b)
    assert out.shape == (B, T, N, H)
    assert jnp.allclose(out, ref, atol=1e-3, rtol=1e-3), "mismatch vs JAX reference"

    print("KERNEL_OK")
</pallas_src>

<mosaic_0001>
module attributes {stable_mosaic.version = 11 : i64} {
  func.func @spatial_attention_kernel(%arg0: i32, %arg1: memref<8x512xf32, #tpu.memory_space<vmem>>, %arg2: memref<512x16xf32, #tpu.memory_space<vmem>>, %arg3: memref<16x512xf32, #tpu.memory_space<vmem>>, %arg4: memref<1xf32, #tpu.memory_space<smem>>, %arg5: memref<8x512xf32, #tpu.memory_space<vmem>>) attributes {dimension_semantics = [#tpu.dimension_semantics<parallel>], iteration_bounds = array<i64: 1>, scalar_prefetch = 0 : i64, scratch_operands = 0 : i64, tpu.core_type = #tpu.core_type<tc>, window_params = [{transform_indices = @transform_0, window_bounds = array<i64: 8, 512>}, {pipeline_mode = #tpu.pipeline_mode<synchronous>, transform_indices = @transform_1, window_bounds = array<i64: 512, 16>}, {pipeline_mode = #tpu.pipeline_mode<synchronous>, transform_indices = @transform_2, window_bounds = array<i64: 16, 512>}, {transform_indices = @transform_3, window_bounds = array<i64: 1>}, {transform_indices = @transform_4, window_bounds = array<i64: 8, 512>}]} {
    %c0 = arith.constant 0 : index
    %c0_0 = arith.constant 0 : index
    %0 = vector.load %arg1[%c0, %c0_0] : memref<8x512xf32, #tpu.memory_space<vmem>>, vector<8x512xf32>
    %c0_1 = arith.constant 0 : index
    %c0_2 = arith.constant 0 : index
    %1 = vector.load %arg2[%c0_1, %c0_2] : memref<512x16xf32, #tpu.memory_space<vmem>>, vector<512x16xf32>
    %cst = arith.constant dense<0.000000e+00> : vector<8x16xf32>
    %2 = tpu.matmul %0, %1, %cst {dimension_numbers = #tpu.dot_dimension_numbers<[1], [0], [0], [1], [0, 0, 1, 1], [], []>} : vector<8x512xf32>, vector<512x16xf32>, vector<8x16xf32> -> vector<8x16xf32>
    %c0_3 = arith.constant 0 : index
    %3 = memref.load %arg4[%c0_3] : memref<1xf32, #tpu.memory_space<smem>>
    %4 = vector.broadcast %3 : f32 to vector<8x16xf32>
    %5 = arith.addf %2, %4 : vector<8x16xf32>
    %cst_4 = arith.constant dense<0xFF800000> : vector<8xf32>
    %6 = vector.multi_reduction <maximumf>, %5, %cst_4 [1] : vector<8x16xf32> to vector<8xf32>
    %7 = vector.shape_cast %6 : vector<8xf32> to vector<8x1xf32>
    %8 = vector.broadcast %7 : vector<8x1xf32> to vector<8x16xf32>
    %9 = arith.subf %5, %8 : vector<8x16xf32>
    %10 = math.exp %9 : vector<8x16xf32>
    %cst_5 = arith.constant dense<0.000000e+00> : vector<8xf32>
    %11 = vector.multi_reduction <add>, %10, %cst_5 [1] : vector<8x16xf32> to vector<8xf32>
    %12 = vector.shape_cast %11 : vector<8xf32> to vector<8x1xf32>
    %13 = vector.broadcast %12 : vector<8x1xf32> to vector<8x16xf32>
    %14 = arith.divf %10, %13 : vector<8x16xf32>
    %c0_6 = arith.constant 0 : index
    %c0_7 = arith.constant 0 : index
    %15 = vector.load %arg3[%c0_6, %c0_7] : memref<16x512xf32, #tpu.memory_space<vmem>>, vector<16x512xf32>
    %cst_8 = arith.constant dense<0.000000e+00> : vector<8x512xf32>
    %16 = tpu.matmul %14, %15, %cst_8 {dimension_numbers = #tpu.dot_dimension_numbers<[1], [0], [0], [1], [0, 0, 1, 1], [], []>} : vector<8x16xf32>, vector<16x512xf32>, vector<8x512xf32> -> vector<8x512xf32>
    %17 = arith.mulf %0, %16 : vector<8x512xf32>
    %c0_9 = arith.constant 0 : index
    %c0_10 = arith.constant 0 : index
    %18 = vector.load %arg5[%c0_9, %c0_10] : memref<8x512xf32, #tpu.memory_space<vmem>>, vector<8x512xf32>
    tpu.vector_store %arg5[%c0_9, %c0_10], %17 {strides = array<i32>} : memref<8x512xf32, #tpu.memory_space<vmem>>, vector<8x512xf32>,
    return
  }
  func.func @transform_0(%arg0: i32) -> (i32, i32) {
    %c0_i32 = arith.constant 0 : i32
    %c0_i32_0 = arith.constant 0 : i32
    return %arg0, %c0_i32 : i32, i32
  }
  func.func @transform_1(%arg0: i32) -> (i32, i32) {
    %c0_i32 = arith.constant 0 : i32
    %c0_i32_0 = arith.constant 0 : i32
    %c0_i32_1 = arith.constant 0 : i32
    return %c0_i32, %c0_i32_0 : i32, i32
  }
  func.func @transform_2(%arg0: i32) -> (i32, i32) {
    %c0_i32 = arith.constant 0 : i32
    %c0_i32_0 = arith.constant 0 : i32
    %c0_i32_1 = arith.constant 0 : i32
    return %c0_i32, %c0_i32_0 : i32, i32
  }
  func.func @transform_3(%arg0: i32) -> i32 {
    %c0_i32 = arith.constant 0 : i32
    %c0_i32_0 = arith.constant 0 : i32
    return %c0_i32 : i32
  }
  func.func @transform_4(%arg0: i32) -> (i32, i32) {
    %c0_i32 = arith.constant 0 : i32
    %c0_i32_0 = arith.constant 0 : i32
    return %arg0, %c0_i32 : i32, i32
  }
}

</mosaic_0001>

<llo_original>
// kernel: tpu_custom_call.1
$region0: #{tpu_custom_call.1}
  #allocation0 [shape = 'u32[]', space=smem, size = 0x4, offset = 0x4, fixed_abs, tag = 'smem constant byte address 0x4 - core index']
  #allocation1 [shape = 'u32[144,128]{1,0:T(1,128)}', space=vmem, size = 0x12000, scoped, tag = 'internal scratch']
  #allocation2 [shape = 'f32[1]{0:T(128)S(6)}', space=smem, size = 0x200, scoped, tag = 'scoped memory for tpu_custom_call.1']
  %s0 = inlined_call_operand.vmem [shape: f32[8,512], index: 0, kind: input, shape index: {}]
  %s1 = inlined_call_operand.vmem [shape: f32[512,16], index: 1, kind: input, shape index: {}]
  %s2 = inlined_call_operand.vmem [shape: f32[16,512], index: 2, kind: input, shape index: {}]
  %s3 = inlined_call_operand.<no memory space> [shape: f32[1], index: 3, kind: input, shape index: {}]
  %s4 = inlined_call_operand.hbm [shape: f32[8,512], index: 4, kind: output, shape index: {}]
  %s5 = sld [smem:[#allocation0]]
  $region26: #{tpu_custom_call.1} parent=0
    _
  %s7 = ssub.s32 1, %s5
  %s8 = scalar_select 0, %s7, %s5
  %9 = sst [smem:[#allocation2]] %s3
  $region1: #{tpu_custom_call.1} parent=0
    #allocation3 [shape = 'u8[16384]{0}', space=vmem, size = 0x4000, scoped, tag = 'output window, operand 0, single buffered']
    #allocation4 [shape = 's32[1]{0}', space=sflag, size = 0x4, scoped, tag = 'scoped memory for tpu_custom_call.1']
    %10 = vsyncpa [#allocation4], 0
    // Predicated region
    $region2: #{tpu_custom_call.1} parent=1 // pred_check
      _
    $region3: #{tpu_custom_call.1} parent=1 // pred_check_branch
      %12 = sbr.rel (0) target = $region5
    $region4: #{tpu_custom_call.1} parent=1 // pred_region
      _
    $region5: #{tpu_custom_call.1} parent=1 // pred_fallthru
      _
    // Predicated region
    $region6: #{tpu_custom_call.1} parent=1 // pred_check
      _
    $region7: #{tpu_custom_call.1} parent=1 // pred_check_branch
      %14 = sbr.rel (0) target = $region9
    $region8: #{tpu_custom_call.1} parent=1 // pred_region
      _
    $region9: #{tpu_custom_call.1} parent=1 // pred_fallthru
      _
    // Predicated region
    $region10: #{tpu_custom_call.1} parent=1 // pred_check
      _
    $region11: #{tpu_custom_call.1} parent=1 // pred_check_branch
      %16 = sbr.rel (0) target = $region13
    $region12: #{tpu_custom_call.1} parent=1 // pred_region
      _
    $region13: #{tpu_custom_call.1} parent=1 // pred_fallthru
      _
    // Predicated region
    $region14: #{tpu_custom_call.1} parent=1 // pred_check
      _
    $region15: #{tpu_custom_call.1} parent=1 // pred_check_branch
      %18 = sbr.rel (0) target = $region17
    $region16: #{tpu_custom_call.1} parent=1 // pred_region
      _
    $region17: #{tpu_custom_call.1} parent=1 // pred_fallthru
      _
    %v19 = vld [vmem:[%s0] sm:$0xff]
    %v20 = vld [vmem:[%s0 + $0x8] sm:$0xff]
    %v21 = vld [vmem:[%s0 + $0x10] sm:$0xff]
    %v22 = vld [vmem:[%s0 + $0x18] sm:$0xff]
    %v23 = vld [vmem:[%s1] sm:$0xff]
    %v24 = vld [vmem:[%s1 + $0x8] sm:$0xff]
    %v25 = vld [vmem:[%s1 + $0x10] sm:$0xff]
    %v26 = vld [vmem:[%s1 + $0x18] sm:$0xff]
    %v27 = vld [vmem:[%s1 + $0x20] sm:$0xff]
    %v28 = vld [vmem:[%s1 + $0x28] sm:$0xff]
    %v29 = vld [vmem:[%s1 + $0x30] sm:$0xff]
    %v30 = vld [vmem:[%s1 + $0x38] sm:$0xff]
    %v31 = vld [vmem:[%s1 + $0x40] sm:$0xff]
    %v32 = vld [vmem:[%s1 + $0x48] sm:$0xff]
    %v33 = vld [vmem:[%s1 + $0x50] sm:$0xff]
    %v34 = vld [vmem:[%s1 + $0x58] sm:$0xff]
    %v35 = vld [vmem:[%s1 + $0x60] sm:$0xff]
    %v36 = vld [vmem:[%s1 + $0x68] sm:$0xff]
    %v37 = vld [vmem:[%s1 + $0x70] sm:$0xff]
    %v38 = vld [vmem:[%s1 + $0x78] sm:$0xff]
    %v39 = vld [vmem:[%s1 + $0x80] sm:$0xff]
    %v40 = vld [vmem:[%s1 + $0x88] sm:$0xff]
    %v41 = vld [vmem:[%s1 + $0x90] sm:$0xff]
    %v42 = vld [vmem:[%s1 + $0x98] sm:$0xff]
    %v43 = vld [vmem:[%s1 + $0xa0] sm:$0xff]
    %v44 = vld [vmem:[%s1 + $0xa8] sm:$0xff]
    %v45 = vld [vmem:[%s1 + $0xb0] sm:$0xff]
    %v46 = vld [vmem:[%s1 + $0xb8] sm:$0xff]
    %v47 = vld [vmem:[%s1 + $0xc0] sm:$0xff]
    %v48 = vld [vmem:[%s1 + $0xc8] sm:$0xff]
    %v49 = vld [vmem:[%s1 + $0xd0] sm:$0xff]
    %v50 = vld [vmem:[%s1 + $0xd8] sm:$0xff]
    %v51 = vld [vmem:[%s1 + $0xe0] sm:$0xff]
    %v52 = vld [vmem:[%s1 + $0xe8] sm:$0xff]
    %v53 = vld [vmem:[%s1 + $0xf0] sm:$0xff]
    %v54 = vld [vmem:[%s1 + $0xf8] sm:$0xff]
    %v55 = vld [vmem:[%s1 + $0x100] sm:$0xff]
    %v56 = vld [vmem:[%s1 + $0x108] sm:$0xff]
    %v57 = vld [vmem:[%s1 + $0x110] sm:$0xff]
    %v58 = vld [vmem:[%s1 + $0x118] sm:$0xff]
    %v59 = vld [vmem:[%s1 + $0x120] sm:$0xff]
    %v60 = vld [vmem:[%s1 + $0x128] sm:$0xff]
    %v61 = vld [vmem:[%s1 + $0x130] sm:$0xff]
    %v62 = vld [vmem:[%s1 + $0x138] sm:$0xff]
    %v63 = vld [vmem:[%s1 + $0x140] sm:$0xff]
    %v64 = vld [vmem:[%s1 + $0x148] sm:$0xff]
    %v65 = vld [vmem:[%s1 + $0x150] sm:$0xff]
    %v66 = vld [vmem:[%s1 + $0x158] sm:$0xff]
    %v67 = vld [vmem:[%s1 + $0x160] sm:$0xff]
    %v68 = vld [vmem:[%s1 + $0x168] sm:$0xff]
    %v69 = vld [vmem:[%s1 + $0x170] sm:$0xff]
    %v70 = vld [vmem:[%s1 + $0x178] sm:$0xff]
    %v71 = vld [vmem:[%s1 + $0x180] sm:$0xff]
    %v72 = vld [vmem:[%s1 + $0x188] sm:$0xff]
    %v73 = vld [vmem:[%s1 + $0x190] sm:$0xff]
    %v74 = vld [vmem:[%s1 + $0x198] sm:$0xff]
    %v75 = vld [vmem:[%s1 + $0x1a0] sm:$0xff]
    %v76 = vld [vmem:[%s1 + $0x1a8] sm:$0xff]
    %v77 = vld [vmem:[%s1 + $0x1b0] sm:$0xff]
    %v78 = vld [vmem:[%s1 + $0x1b8] sm:$0xff]
    %v79 = vld [vmem:[%s1 + $0x1c0] sm:$0xff]
    %v80 = vld [vmem:[%s1 + $0x1c8] sm:$0xff]
    %v81 = vld [vmem:[%s1 + $0x1d0] sm:$0xff]
    %v82 = vld [vmem:[%s1 + $0x1d8] sm:$0xff]
    %v83 = vld [vmem:[%s1 + $0x1e0] sm:$0xff]
    %v84 = vld [vmem:[%s1 + $0x1e8] sm:$0xff]
    %v85 = vld [vmem:[%s1 + $0x1f0] sm:$0xff]
    %v86 = vld [vmem:[%s1 + $0x1f8] sm:$0xff]
    %s87 = sld [smem:[#allocation2]]
    %v88 = vstv %s87
    %89 = vmatprep.subr.mxu0 0.0
    %90 = vmatpush1.msra.mxu0 %v23
    %91 = vmatprep.subr.mxu0 0.0
    %92 = vmatpush1.msra.mxu0 %v24
    %93 = vmatprep.subr.mxu0 0.0
    %94 = vmatpush1.msra.mxu0 %v25
    %95 = vmatprep.subr.mxu0 0.0
    %96 = vmatpush1.msra.mxu0 %v26
    %97 = vmatprep.subr.mxu0 0.0
    %98 = vmatpush1.msra.mxu0 %v27
    %99 = vmatprep.subr.mxu0 0.0
    %100 = vmatpush1.msra.mxu0 %v28
    %101 = vmatprep.subr.mxu0 0.0
    %102 = vmatpush1.msra.mxu0 %v29
    %103 = vmatprep.subr.mxu0 0.0
    %104 = vmatpush1.msra.mxu0 %v30
    %105 = vmatprep.subr.mxu0 0.0
    %106 = vmatpush1.msra.mxu0 %v31
    %107 = vmatprep.subr.mxu0 0.0
    %108 = vmatpush1.msra.mxu0 %v32
    %109 = vmatprep.subr.mxu0 0.0
    %110 = vmatpush1.msra.mxu0 %v33
    %111 = vmatprep.subr.mxu0 0.0
    %112 = vmatpush1.msra.mxu0 %v34
    %113 = vmatprep.subr.mxu0 0.0
    %114 = vmatpush1.msra.mxu0 %v35
    %115 = vmatprep.subr.mxu0 0.0
    %116 = vmatpush1.msra.mxu0 %v36
    %117 = vmatprep.subr.mxu0 0.0
    %118 = vmatpush1.msra.mxu0 %v37
    %119 = vmatprep.subr.mxu0 0.0
    %120 = vmatpush1.msra.mxu0 %v38
    %121 = vmatprep.subr.mxu0 0.0
    %122 = vmatpush1.msra.mxu0 %v39
    %123 = vmatprep.subr.mxu0 0.0
    %124 = vmatpush1.msra.mxu0 %v40
    %125 = vmatprep.subr.mxu0 0.0
    %126 = vmatpush1.msra.mxu0 %v41
    %127 = vmatprep.subr.mxu0 0.0
    %128 = vmatpush1.msra.mxu0 %v42
    %129 = vmatprep.subr.mxu0 0.0
    %130 = vmatpush1.msra.mxu0 %v43
    %131 = vmatprep.subr.mxu0 0.0
    %132 = vmatpush1.msra.mxu0 %v44
    %133 = vmatprep.subr.mxu0 0.0
    %134 = vmatpush1.msra.mxu0 %v45
    %135 = vmatprep.subr.mxu0 0.0
    %136 = vmatpush1.msra.mxu0 %v46
    %137 = vmatprep.subr.mxu0 0.0
    %138 = vmatpush1.msra.mxu0 %v47
    %139 = vmatprep.subr.mxu0 0.0
    %140 = vmatpush1.msra.mxu0 %v48
    %141 = vmatprep.subr.mxu0 0.0
    %142 = vmatpush1.msra.mxu0 %v49
    %143 = vmatprep.subr.mxu0 0.0
    %144 = vmatpush1.msra.mxu0 %v50
    %145 = vmatprep.subr.mxu0 0.0
    %146 = vmatpush1.msra.mxu0 %v51
    %147 = vmatprep.subr.mxu0 0.0
    %148 = vmatpush1.msra.mxu0 %v52
    %149 = vmatprep.subr.mxu0 0.0
    %150 = vmatpush1.msra.mxu0 %v53
    %151 = vmatprep.subr.mxu0 0.0
    %152 = vmatpush1.msra.mxu0 %v54
    %153 = vmatprep.mubr.f32.mxu0 %v20
    %154 = vmatmul.mubr.f32.gmra.mrb[0].mxu0 %v19
    %v155 = vpop.f32.mrb[0].mxu0
    %v156 = vadd.f32 %v88, %v155
    %v157 = vpop.f32.mrb[0].mxu0
    %158 = vdwg.mxu0
    %159 = vmatprep.subr.mxu0 0.0
    %160 = vmatpush1.msra.mxu0 %v55
    %161 = vmatprep.subr.mxu0 0.0
    %162 = vmatpush1.msra.mxu0 %v56
    %163 = vmatprep.subr.mxu0 0.0
    %164 = vmatpush1.msra.mxu0 %v57
    %165 = vmatprep.subr.mxu0 0.0
    %166 = vmatpush1.msra.mxu0 %v58
    %167 = vmatprep.subr.mxu0 0.0
    %168 = vmatpush1.msra.mxu0 %v59
    %169 = vmatprep.subr.mxu0 0.0
    %170 = vmatpush1.msra.mxu0 %v60
    %171 = vmatprep.subr.mxu0 0.0
    %172 = vmatpush1.msra.mxu0 %v61
    %173 = vmatprep.subr.mxu0 0.0
    %174 = vmatpush1.msra.mxu0 %v62
    %175 = vmatprep.subr.mxu0 0.0
    %176 = vmatpush1.msra.mxu0 %v63
    %177 = vmatprep.subr.mxu0 0.0
    %178 = vmatpush1.msra.mxu0 %v64
    %179 = vmatprep.subr.mxu0 0.0
    %180 = vmatpush1.msra.mxu0 %v65
    %181 = vmatprep.subr.mxu0 0.0
    %182 = vmatpush1.msra.mxu0 %v66
    %183 = vmatprep.subr.mxu0 0.0
    %184 = vmatpush1.msra.mxu0 %v67
    %185 = vmatprep.subr.mxu0 0.0
    %186 = vmatpush1.msra.mxu0 %v68
    %187 = vmatprep.subr.mxu0 0.0
    %188 = vmatpush1.msra.mxu0 %v69
    %189 = vmatprep.subr.mxu0 0.0
    %190 = vmatpush1.msra.mxu0 %v70
    %191 = vmatprep.subr.mxu0 0.0
    %192 = vmatpush1.msra.mxu0 %v71
    %193 = vmatprep.subr.mxu0 0.0
    %194 = vmatpush1.msra.mxu0 %v72
    %195 = vmatprep.subr.mxu0 0.0
    %196 = vmatpush1.msra.mxu0 %v73
    %197 = vmatprep.subr.mxu0 0.0
    %198 = vmatpush1.msra.mxu0 %v74
    %199 = vmatprep.subr.mxu0 0.0
    %200 = vmatpush1.msra.mxu0 %v75
    %201 = vmatprep.subr.mxu0 0.0
    %202 = vmatpush1.msra.mxu0 %v76
    %203 = vmatprep.subr.mxu0 0.0
    %204 = vmatpush1.msra.mxu0 %v77
    %205 = vmatprep.subr.mxu0 0.0
    %206 = vmatpush1.msra.mxu0 %v78
    %207 = vmatprep.subr.mxu0 0.0
    %208 = vmatpush1.msra.mxu0 %v79
    %209 = vmatprep.subr.mxu0 0.0
    %210 = vmatpush1.msra.mxu0 %v80
    %211 = vmatprep.subr.mxu0 0.0
    %212 = vmatpush1.msra.mxu0 %v81
    %213 = vmatprep.subr.mxu0 0.0
    %214 = vmatpush1.msra.mxu0 %v82
    %215 = vmatprep.subr.mxu0 0.0
    %216 = vmatpush1.msra.mxu0 %v83
    %217 = vmatprep.subr.mxu0 0.0
    %218 = vmatpush1.msra.mxu0 %v84
    %219 = vmatprep.subr.mxu0 0.0
    %220 = vmatpush1.msra.mxu0 %v85
    %221 = vmatprep.subr.mxu0 0.0
    %222 = vmatpush1.msra.mxu0 %v86
    %223 = vmatprep.mubr.f32.mxu0 %v22
    %224 = vmatmul.mubr.f32.gmra.mrb[0].mxu0 %v21
    %v225 = vpop.f32.mrb[0].mxu0
    %v226 = vadd.f32 %v156, %v225
    %v227 = vpop.f32.mrb[0].mxu0
    %228 = vdwg.mxu0
    %vm229 = vcmask 130048
    %v230 = vsel %vm229, %v226, -inf
    %231 = vmax.xlane.f32.xlu0 %v230
    %v232 = vpop.xlane.xlu0 %231
    %v233 = vsub.f32 %v226, %v232
    %v234 = vmul.f32 %v233, 1.442695
    %v235 = vpow.pop %v234
    %v236 = vsel %vm229, %v235, 0.0
    %237 = vadd.xlane.f32.xlu0 %v236
    %v238 = vpop.xlane.xlu0 %237
    %v239 = vrcp.pop %v238
    %v240 = vmul.f32 %v235, %v239
    %v241 = vld [vmem:[%s2] sm:$0xff]
    %v242 = vld [vmem:[%s2 + $0x8] sm:$0xff]
    %v243 = vld [vmem:[%s2 + $0x10] sm:$0xff]
    %v244 = vld [vmem:[%s2 + $0x18] sm:$0xff]
    %v245 = vld [vmem:[%s2 + $0x20] sm:$0xff]
    %v246 = vld [vmem:[%s2 + $0x28] sm:$0xff]
    %v247 = vld [vmem:[%s2 + $0x30] sm:$0xff]
    %v248 = vld [vmem:[%s2 + $0x38] sm:$0xff]
    %v250 = vsel %vm229, %v240, 0
    %252 = vmatprep.subr.mxu0 %v242
    %253 = vmatpush1.msra.mxu0 %v241
    %254 = vmatprep.subr.mxu0 %v246
    %255 = vmatpush1.msra.mxu0 %v245
    %256 = vmatprep.subr.mxu0 0.0
    %257 = vmatpush1.msra.mxu0 0.0
    %258 = vmatprep.subr.mxu0 0.0
    %259 = vmatpush1.msra.mxu0 0.0
    %260 = vmatprep.subr.mxu0 0.0
    %261 = vmatpush1.msra.mxu0 0.0
    %262 = vmatprep.subr.mxu0 0.0
    %263 = vmatpush1.msra.mxu0 0.0
    %264 = vmatprep.subr.mxu0 0.0
    %265 = vmatpush1.msra.mxu0 0.0
    %266 = vmatprep.subr.mxu0 0.0
    %267 = vmatpush1.msra.mxu0 0.0
    %268 = vmatprep.subr.mxu0 0.0
    %269 = vmatpush1.msra.mxu0 0.0
    %270 = vmatprep.subr.mxu0 0.0
    %271 = vmatpush1.msra.mxu0 0.0
    %272 = vmatprep.subr.mxu0 0.0
    %273 = vmatpush1.msra.mxu0 0.0
    %274 = vmatprep.subr.mxu0 0.0
    %275 = vmatpush1.msra.mxu0 0.0
    %276 = vmatprep.subr.mxu0 0.0
    %277 = vmatpush1.msra.mxu0 0.0
    %278 = vmatprep.subr.mxu0 0.0
    %279 = vmatpush1.msra.mxu0 0.0
    %280 = vmatprep.subr.mxu0 0.0
    %281 = vmatpush1.msra.mxu0 0.0
    %282 = vmatprep.subr.mxu0 0.0
    %283 = vmatpush1.msra.mxu0 0.0
    %284 = vmatprep.subr.mxu0 0.0
    %285 = vmatpush1.msra.mxu0 0.0
    %286 = vmatprep.subr.mxu0 0.0
    %287 = vmatpush1.msra.mxu0 0.0
    %288 = vmatprep.subr.mxu0 0.0
    %289 = vmatpush1.msra.mxu0 0.0
    %290 = vmatprep.subr.mxu0 0.0
    %291 = vmatpush1.msra.mxu0 0.0
    %292 = vmatprep.subr.mxu0 0.0
    %293 = vmatpush1.msra.mxu0 0.0
    %294 = vmatprep.subr.mxu0 0.0
    %295 = vmatpush1.msra.mxu0 0.0
    %296 = vmatprep.subr.mxu0 0.0
    %297 = vmatpush1.msra.mxu0 0.0
    %298 = vmatprep.subr.mxu0 0.0
    %299 = vmatpush1.msra.mxu0 0.0
    %300 = vmatprep.subr.mxu0 0.0
    %301 = vmatpush1.msra.mxu0 0.0
    %302 = vmatprep.subr.mxu0 0.0
    %303 = vmatpush1.msra.mxu0 0.0
    %304 = vmatprep.subr.mxu0 0.0
    %305 = vmatpush1.msra.mxu0 0.0
    %306 = vmatprep.subr.mxu0 0.0
    %307 = vmatpush1.msra.mxu0 0.0
    %308 = vmatprep.subr.mxu0 0.0
    %309 = vmatpush1.msra.mxu0 0.0
    %310 = vmatprep.subr.mxu0 0.0
    %311 = vmatpush1.msra.mxu0 0.0
    %312 = vmatprep.subr.mxu0 0.0
    %313 = vmatpush1.msra.mxu0 0.0
    %314 = vmatprep.subr.mxu0 0.0
    %315 = vmatpush1.msra.mxu0 0.0
    %316 = vmatprep.mubr.f32.mxu0 0.0
    %317 = vmatmul.mubr.f32.gmra.mrb[0].mxu0 %v250
    %v318 = vpop.f32.mrb[0].mxu0
    %v319 = vadd.f32 0.0, %v318
    %v320 = vpop.f32.mrb[0].mxu0
    %v321 = vadd.f32 0.0, %v320
    %322 = vdwg.mxu0
    %323 = vmatprep.subr.mxu0 %v244
    %324 = vmatpush1.msra.mxu0 %v243
    %325 = vmatprep.subr.mxu0 %v248
    %326 = vmatpush1.msra.mxu0 %v247
    %327 = vmatprep.subr.mxu0 0.0
    %328 = vmatpush1.msra.mxu0 0.0
    %329 = vmatprep.subr.mxu0 0.0
    %330 = vmatpush1.msra.mxu0 0.0
    %331 = vmatprep.subr.mxu0 0.0
    %332 = vmatpush1.msra.mxu0 0.0
    %333 = vmatprep.subr.mxu0 0.0
    %334 = vmatpush1.msra.mxu0 0.0
    %335 = vmatprep.subr.mxu0 0.0
    %336 = vmatpush1.msra.mxu0 0.0
    %337 = vmatprep.subr.mxu0 0.0
    %338 = vmatpush1.msra.mxu0 0.0
    %339 = vmatprep.subr.mxu0 0.0
    %340 = vmatpush1.msra.mxu0 0.0
    %341 = vmatprep.subr.mxu0 0.0
    %342 = vmatpush1.msra.mxu0 0.0
    %343 = vmatprep.subr.mxu0 0.0
    %344 = vmatpush1.msra.mxu0 0.0
    %345 = vmatprep.subr.mxu0 0.0
    %346 = vmatpush1.msra.mxu0 0.0
    %347 = vmatprep.subr.mxu0 0.0
    %348 = vmatpush1.msra.mxu0 0.0
    %349 = vmatprep.subr.mxu0 0.0
    %350 = vmatpush1.msra.mxu0 0.0
    %351 = vmatprep.subr.mxu0 0.0
    %352 = vmatpush1.msra.mxu0 0.0
    %353 = vmatprep.subr.mxu0 0.0
    %354 = vmatpush1.msra.mxu0 0.0
    %355 = vmatprep.subr.mxu0 0.0
    %356 = vmatpush1.msra.mxu0 0.0
    %357 = vmatprep.subr.mxu0 0.0
    %358 = vmatpush1.msra.mxu0 0.0
    %359 = vmatprep.subr.mxu0 0.0
    %360 = vmatpush1.msra.mxu0 0.0
    %361 = vmatprep.subr.mxu0 0.0
    %362 = vmatpush1.msra.mxu0 0.0
    %363 = vmatprep.subr.mxu0 0.0
    %364 = vmatpush1.msra.mxu0 0.0
    %365 = vmatprep.subr.mxu0 0.0
    %366 = vmatpush1.msra.mxu0 0.0
    %367 = vmatprep.subr.mxu0 0.0
    %368 = vmatpush1.msra.mxu0 0.0
    %369 = vmatprep.subr.mxu0 0.0
    %370 = vmatpush1.msra.mxu0 0.0
    %371 = vmatprep.subr.mxu0 0.0
    %372 = vmatpush1.msra.mxu0 0.0
    %373 = vmatprep.subr.mxu0 0.0
    %374 = vmatpush1.msra.mxu0 0.0
    %375 = vmatprep.subr.mxu0 0.0
    %376 = vmatpush1.msra.mxu0 0.0
    %377 = vmatprep.subr.mxu0 0.0
    %378 = vmatpush1.msra.mxu0 0.0
    %379 = vmatprep.subr.mxu0 0.0
    %380 = vmatpush1.msra.mxu0 0.0
    %381 = vmatprep.subr.mxu0 0.0
    %382 = vmatpush1.msra.mxu0 0.0
    %383 = vmatprep.subr.mxu0 0.0
    %384 = vmatpush1.msra.mxu0 0.0
    %385 = vmatprep.subr.mxu0 0.0
    %386 = vmatpush1.msra.mxu0 0.0
    %387 = vmatprep.mubr.f32.mxu0 0.0
    %388 = vmatmul.mubr.f32.gmra.mrb[0].mxu0 %v250
    %v389 = vpop.f32.mrb[0].mxu0
    %v390 = vadd.f32 0.0, %v389
    %v391 = vpop.f32.mrb[0].mxu0
    %v392 = vadd.f32 0.0, %v391
    %393 = vdwg.mxu0
    %v394 = vmul.f32 %v19, %v319
    %v395 = vmul.f32 %v20, %v321
    %v396 = vmul.f32 %v21, %v390
    %v397 = vmul.f32 %v22, %v392
    %398 = vst [vmem:[#allocation3] sm:$0xff] %v394
    %399 = vst [vmem:[#allocation3 + $0x8] sm:$0xff] %v395
    %400 = vst [vmem:[#allocation3 + $0x10] sm:$0xff] %v396
    %401 = vst [vmem:[#allocation3 + $0x18] sm:$0xff] %v397
    // Predicated region
    $region18: #{tpu_custom_call.1} parent=1 // pred_check
      _
    $region19: #{tpu_custom_call.1} parent=1 // pred_check_branch
      %403 = sbr.rel (0) target = $region21
    $region20: #{tpu_custom_call.1} parent=1 // pred_region
      %s405 = ssub.s32 512, 512
      %406 = vsyncadd [#allocation4], %s405
      %s408 = sshll.u32 [#allocation3], 4
      %s409 = int_to_ptr.vmem [resolvable:$true] %s408
      %411 = dma.vmem_to_hbm [thread:$0]  %s409, 512, %s4, [#allocation4]
    $region21: #{tpu_custom_call.1} parent=1 // pred_fallthru
      _
    // Predicated region
    $region22: #{tpu_custom_call.1} parent=1 // pred_check
      _
    $region23: #{tpu_custom_call.1} parent=1 // pred_check_branch
      %413 = sbr.rel (0) target = $region25
    $region24: #{tpu_custom_call.1} parent=1 // pred_region
      %414 = dma.done [#allocation4], 512
    $region25: #{tpu_custom_call.1} parent=1 // pred_fallthru
      _
    %415 = vsyncpa [#allocation4], 1

</llo_original>
